<compile_context>
chip_gen: v7x
topology: tpu7x:2x2x1
jax: 0.10.0
libtpu: 0.0.40
codegen_flags: <defaults>
</compile_context>

<pallas_src>
import jax
import jax.numpy as jnp
import numpy as np
from jax.experimental import pallas as pl
from jax.experimental.pallas import tpu as pltpu


def _round_up(x, m):
    return ((x + m - 1) // m) * m


# -----------------------------------------------------------------------------
# Static slab / output layout, shared by pack_params and the kernel.
# -----------------------------------------------------------------------------
def _layout(T, O, E, H):
    Hq, Ho, Ht = (H + 3 * E) // 2, (H + 2 * E) // 2, (H + E) // 2
    QW, OW, TW = T * O * O, T * O, T            # per-head output widths (lanes)
    out_w = _round_up(QW + OW + TW, 128)        # lane-dense output width
    w_lane = _round_up(QW, 128)                 # lane offset of the W1_state block
    w2_lane = w_lane + H                        # lane holding the w2 column
    slab_w = max(out_w, _round_up(w2_lane + 1, 128))
    heads = []
    r0 = 0
    # row order in the slab == lane order in the output: q, o1, template
    for name, Hk, ncols, off in (("q", Hq, QW, 0),
                                 ("o", Ho, OW, QW),
                                 ("t", Ht, TW, QW + OW)):
        Sk = _round_up(Hk, 8)                   # sublane-padded hidden rows
        heads.append(dict(name=name, hidden=Hk, rows=Sk, row0=r0,
                          ncols=ncols, out_off=off))
        r0 += Sk
    return dict(heads=heads, n_head_rows=r0, bias_row=r0, n_rows=r0 + 8,
                out_w=out_w, slab_w=slab_w, w_lane=w_lane, w2_lane=w2_lane,
                QW=QW, OW=OW, TW=TW, H=H)


# -----------------------------------------------------------------------------
# One-time host-side packing (NOT in the per-call hot path).
# -----------------------------------------------------------------------------
def pack_params(p):
    temb = np.asarray(p["template_emb"], np.float32)
    o1e = np.asarray(p["o1_emb"], np.float32)
    o2e = np.asarray(p["o2_emb"], np.float32)
    T, E = temb.shape
    O = o1e.shape[0]
    H = np.asarray(p["t_w1"]).shape[1] - E
    lay = _layout(T, O, E, H)

    slab = np.zeros((lay["n_rows"], lay["slab_w"]), np.float32)
    specs = {
        "q": (p["q_w1"], p["q_b1"], p["q_w2"], p["q_b2"], 4),
        "o": (p["o_w1"], p["o_b1"], p["o_w2"], p["o_b2"], 3),
        "t": (p["t_w1"], p["t_b1"], p["t_w2"], p["t_b2"], 2),
    }
    for hd in lay["heads"]:
        w1, b1, w2, b2, nseg = specs[hd["name"]]
        w1 = np.asarray(w1, np.float32)
        b1 = np.asarray(b1, np.float32)
        w2 = np.asarray(w2, np.float32).reshape(-1)
        b2 = float(np.asarray(b2, np.float32).reshape(-1)[0])
        Hk, r0 = hd["hidden"], hd["row0"]
        assert w1.shape == (Hk, H + (nseg - 1) * E)
        # constant (input-independent) first-layer term, hidden on sublanes.
        ca = w1[:, H:H + E] @ temb.T                              # [Hk, T]
        if nseg == 2:                                             # template head
            cst = ca + b1[:, None]                                # cols = t
        elif nseg == 3:                                           # o1 head
            co1 = w1[:, H + E:H + 2 * E] @ o1e.T                  # [Hk, O]
            cst = (ca[:, :, None] + co1[:, None, :]
                   ).reshape(Hk, T * O) + b1[:, None]             # cols = t*O+o1
        else:                                                     # o2/o1 head
            co1 = w1[:, H + E:H + 2 * E] @ o1e.T                  # [Hk, O] (o1)
            co2 = w1[:, H + 2 * E:H + 3 * E] @ o2e.T              # [Hk, O] (o2)
            cst = (ca[:, :, None, None] + co2[:, None, :, None] +
                   co1[:, None, None, :]
                   ).reshape(Hk, T * O * O) + b1[:, None]         # t*O*O+o2*O+o1
        slab[r0:r0 + Hk, 0:hd["ncols"]] = cst
        slab[r0:r0 + Hk, lay["w_lane"]:lay["w_lane"] + H] = w1[:, 0:H]
        slab[r0:r0 + Hk, lay["w2_lane"]] = w2
        # second-layer bias replicated over this head's output lanes.
        slab[lay["bias_row"], hd["out_off"]:hd["out_off"] + hd["ncols"]] = b2
    return {"const": jnp.asarray(slab)}


# -----------------------------------------------------------------------------
# Pallas kernel: whole forward in one invocation (tiny working set, no grid).
# -----------------------------------------------------------------------------
def _make_kernel(B, lay):
    H = lay["H"]
    n_rows, heads = lay["n_head_rows"], lay["heads"]
    w_lane, w2_lane = lay["w_lane"], lay["w2_lane"]
    brow, out_w = lay["bias_row"], lay["out_w"]

    def kernel(state_ref, c_ref, out_ref):
        state = state_ref[...]                                    # [B, H]
        wall = c_ref[0:n_rows, w_lane:w_lane + H]                 # [R, H]
        w2c = c_ref[0:n_rows, w2_lane:w2_lane + 1]                # [R, 1]
        # State-dependent first-layer term with hidden on SUBLANES; a tiny
        # matvec done as VPU mul + lane reduce (MXU gains nothing at K=H=32).
        cs = [jnp.sum(wall * state[b:b + 1, :], axis=1, keepdims=True)
              for b in range(B)]                                  # B x [R, 1]
        used = 0
        for hd in heads:
            r0, rk = hd["row0"], hd["rows"]
            ncols, off = hd["ncols"], hd["out_off"]
            cst = c_ref[r0:r0 + rk, 0:ncols]                      # [rk, ncols]
            w2k = w2c[r0:r0 + rk, :]                              # [rk, 1]
            rows = []
            for b in range(B):
                pre = cs[b][r0:r0 + rk, :] + cst                  # [rk, ncols]
                hb = jnp.maximum(pre, 0.0) * w2k                  # [rk, ncols]
                rows.append(jnp.sum(hb, axis=0, keepdims=True))   # [1, ncols]
            res = jnp.concatenate(rows, axis=0)                   # [B, ncols]
            b2 = c_ref[brow:brow + 1, off:off + 1]                # [1, 1]
            out_ref[:, off:off + ncols] = res + b2
            used = off + ncols
        if used < out_w:                                          # zero the tail
            out_ref[:, used:out_w] = jnp.zeros((B, out_w - used), jnp.float32)

    return kernel


# -----------------------------------------------------------------------------
# Forward wrapper: only the pallas_call (+ free slices / reshapes) when jitted.
# -----------------------------------------------------------------------------
def make_acg_forward(B, T, O, E, H):
    lay = _layout(T, O, E, H)
    QW, OW, TW, out_w = lay["QW"], lay["OW"], lay["TW"], lay["out_w"]
    vmem = pl.BlockSpec(memory_space=pltpu.MemorySpace.VMEM)

    elems = sum(hd["rows"] * hd["ncols"] for hd in lay["heads"]) * B
    cost = pl.CostEstimate(
        flops=2 * lay["n_head_rows"] * H * B + 4 * elems,
        transcendentals=0,
        bytes_accessed=4 * (lay["n_rows"] * lay["slab_w"] + B * H + B * out_w))

    call = pl.pallas_call(
        _make_kernel(B, lay),
        out_shape=jax.ShapeDtypeStruct((B, out_w), jnp.float32),
        in_specs=[vmem, vmem],
        out_specs=vmem,
        cost_estimate=cost,
    )

    @jax.jit
    def forward(encoded_state, packed):
        out = call(encoded_state.astype(jnp.float32), packed["const"])
        tlog = out[:, QW + OW:QW + OW + TW]                 # [B, T]
        o1log = out[:, QW:QW + OW].reshape(B, T, O)         # [B, T, o1]
        qlog = out[:, 0:QW].reshape(B, T, O, O)             # [B, T, o2, o1]
        return tlog, o1log, qlog

    return forward


# -----------------------------------------------------------------------------
# Deterministic parameter init (mirrors nn.Embedding N(0,1), nn.Linear U(+/-1/sqrt(fan_in))).
# -----------------------------------------------------------------------------
def init_params(key, T, O, E, H):
    ks = list(jax.random.split(key, 9))

    def linear(k, out_f, in_f):
        kw, kb = jax.random.split(k)
        bound = 1.0 / np.sqrt(in_f)
        w = jax.random.uniform(kw, (out_f, in_f), jnp.float32, -bound, bound)
        b = jax.random.uniform(kb, (out_f,), jnp.float32, -bound, bound)
        return w, b

    Ht, Ho, Hq = (H + E) // 2, (H + 2 * E) // 2, (H + 3 * E) // 2
    p = {}
    p["template_emb"] = jax.random.normal(ks[0], (T, E), jnp.float32)
    p["o1_emb"] = jax.random.normal(ks[1], (O, E), jnp.float32)
    p["o2_emb"] = jax.random.normal(ks[2], (O, E), jnp.float32)
    p["t_w1"], p["t_b1"] = linear(ks[3], Ht, H + E)
    p["t_w2"], p["t_b2"] = linear(ks[4], 1, Ht)
    p["o_w1"], p["o_b1"] = linear(ks[5], Ho, H + 2 * E)
    p["o_w2"], p["o_b2"] = linear(ks[6], 1, Ho)
    p["q_w1"], p["q_b1"] = linear(ks[7], Hq, H + 3 * E)
    p["q_w2"], p["q_b2"] = linear(ks[8], 1, Hq)
    return p


# -----------------------------------------------------------------------------
# Pure-JAX reference mirroring the PyTorch forward (concat + MLP) exactly.
# -----------------------------------------------------------------------------
def reference_forward(encoded_state, p):
    B, H = encoded_state.shape
    T, E = p["template_emb"].shape
    O = p["o1_emb"].shape[0]
    te, o1e, o2e = p["template_emb"], p["o1_emb"], p["o2_emb"]

    def mlp(x, w1, b1, w2, b2):
        h = jax.nn.relu(jnp.matmul(x, w1.T) + b1)
        return (jnp.matmul(h, w2.T) + b2)[..., 0]

    s_bt = jnp.broadcast_to(encoded_state[:, None, :], (B, T, H))
    t_bt = jnp.broadcast_to(te[None, :, :], (B, T, E))
    tlog = mlp(jnp.concatenate([s_bt, t_bt], -1),
               p["t_w1"], p["t_b1"], p["t_w2"], p["t_b2"])

    s_bto = jnp.broadcast_to(encoded_state[:, None, None, :], (B, T, O, H))
    t_bto = jnp.broadcast_to(te[None, :, None, :], (B, T, O, E))
    o1_bto = jnp.broadcast_to(o1e[None, None, :, :], (B, T, O, E))
    o1log = mlp(jnp.concatenate([s_bto, t_bto, o1_bto], -1),
                p["o_w1"], p["o_b1"], p["o_w2"], p["o_b2"])

    # third axis indexes o2, fourth axis indexes o1 (matches torch expand/cat order)
    s_q = jnp.broadcast_to(encoded_state[:, None, None, None, :], (B, T, O, O, H))
    t_q = jnp.broadcast_to(te[None, :, None, None, :], (B, T, O, O, E))
    o1_q = jnp.broadcast_to(o1e[None, None, None, :, :], (B, T, O, O, E))
    o2_q = jnp.broadcast_to(o2e[None, None, :, None, :], (B, T, O, O, E))
    qlog = mlp(jnp.concatenate([s_q, t_q, o1_q, o2_q], -1),
               p["q_w1"], p["q_b1"], p["q_w2"], p["q_b2"])
    return tlog, o1log, qlog


if __name__ == "__main__":
    # small shapes consistent with the module:
    # batch=2, num_templates=8, num_objects=8, embedding_size=16, state_hidden_size=32
    B, T, O, E, H = 2, 8, 8, 16, 32

    key = jax.random.PRNGKey(0)
    kp, kx = jax.random.split(key)
    params = init_params(kp, T, O, E, H)
    encoded_state = jax.random.normal(kx, (B, H), jnp.float32)

    packed = pack_params(params)                 # one-time packing (cold path)
    forward = make_acg_forward(B, T, O, E, H)    # jitted hot path

    outs = forward(encoded_state, packed)
    outs = jax.block_until_ready(outs)

    refs = reference_forward(encoded_state, params)
    for got, want in zip(outs, refs):
        np.testing.assert_allclose(np.asarray(got), np.asarray(want),
                                   rtol=1e-4, atol=1e-4)

    assert outs[0].shape == (B, T)
    assert outs[1].shape == (B, T, O)
    assert outs[2].shape == (B, T, O, O)
    print("KERNEL_OK")
</pallas_src>

<mosaic_0001>
module attributes {stable_mosaic.version = 11 : i64} {
  func.func @kernel(%arg0: memref<2x32xf32, #tpu.memory_space<vmem>>, %arg1: memref<104x640xf32, #tpu.memory_space<vmem>>, %arg2: memref<2x640xf32, #tpu.memory_space<vmem>>) attributes {dimension_semantics = [], scalar_prefetch = 0 : i64, scratch_operands = 0 : i64, tpu.core_type = #tpu.core_type<tc>} {
    %c0 = arith.constant 0 : index
    %c0_0 = arith.constant 0 : index
    %0 = vector.load %arg0[%c0, %c0_0] : memref<2x32xf32, #tpu.memory_space<vmem>>, vector<2x32xf32>
    %c0_1 = arith.constant 0 : index
    %c512 = arith.constant 512 : index
    %1 = vector.load %arg1[%c0_1, %c512] : memref<104x640xf32, #tpu.memory_space<vmem>>, vector<96x32xf32>
    %c0_2 = arith.constant 0 : index
    %c544 = arith.constant 544 : index
    %2 = vector.load %arg1[%c0_2, %c544] : memref<104x640xf32, #tpu.memory_space<vmem>>, vector<96x1xf32>
    %3 = vector.extract_strided_slice %0 {offsets = [0, 0], sizes = [1, 32], strides = [1, 1]} : vector<2x32xf32> to vector<1x32xf32>
    %4 = vector.broadcast %3 : vector<1x32xf32> to vector<96x32xf32>
    %5 = arith.mulf %1, %4 : vector<96x32xf32>
    %cst = arith.constant dense<0.000000e+00> : vector<96xf32>
    %6 = vector.multi_reduction <add>, %5, %cst [1] : vector<96x32xf32> to vector<96xf32>
    %7 = vector.shape_cast %6 : vector<96xf32> to vector<96x1xf32>
    %8 = vector.extract_strided_slice %0 {offsets = [1, 0], sizes = [1, 32], strides = [1, 1]} : vector<2x32xf32> to vector<1x32xf32>
    %9 = vector.broadcast %8 : vector<1x32xf32> to vector<96x32xf32>
    %10 = arith.mulf %1, %9 : vector<96x32xf32>
    %cst_3 = arith.constant dense<0.000000e+00> : vector<96xf32>
    %11 = vector.multi_reduction <add>, %10, %cst_3 [1] : vector<96x32xf32> to vector<96xf32>
    %12 = vector.shape_cast %11 : vector<96xf32> to vector<96x1xf32>
    %c0_4 = arith.constant 0 : index
    %c0_5 = arith.constant 0 : index
    %13 = vector.load %arg1[%c0_4, %c0_5] : memref<104x640xf32, #tpu.memory_space<vmem>>, vector<40x512xf32>
    %14 = vector.extract_strided_slice %2 {offsets = [0, 0], sizes = [40, 1], strides = [1, 1]} : vector<96x1xf32> to vector<40x1xf32>
    %15 = vector.extract_strided_slice %7 {offsets = [0, 0], sizes = [40, 1], strides = [1, 1]} : vector<96x1xf32> to vector<40x1xf32>
    %16 = vector.broadcast %15 : vector<40x1xf32> to vector<40x512xf32>
    %17 = arith.addf %16, %13 : vector<40x512xf32>
    %cst_6 = arith.constant 0.000000e+00 : f32
    %18 = vector.broadcast %cst_6 : f32 to vector<40x512xf32>
    %19 = arith.maximumf %17, %18 : vector<40x512xf32>
    %20 = vector.broadcast %14 : vector<40x1xf32> to vector<40x512xf32>
    %21 = arith.mulf %19, %20 : vector<40x512xf32>
    %cst_7 = arith.constant dense<0.000000e+00> : vector<512xf32>
    %22 = vector.multi_reduction <add>, %21, %cst_7 [0] : vector<40x512xf32> to vector<512xf32>
    %23 = vector.shape_cast %22 : vector<512xf32> to vector<1x512xf32>
    %24 = vector.extract_strided_slice %12 {offsets = [0, 0], sizes = [40, 1], strides = [1, 1]} : vector<96x1xf32> to vector<40x1xf32>
    %25 = vector.broadcast %24 : vector<40x1xf32> to vector<40x512xf32>
    %26 = arith.addf %25, %13 : vector<40x512xf32>
    %cst_8 = arith.constant 0.000000e+00 : f32
    %27 = vector.broadcast %cst_8 : f32 to vector<40x512xf32>
    %28 = arith.maximumf %26, %27 : vector<40x512xf32>
    %29 = vector.broadcast %14 : vector<40x1xf32> to vector<40x512xf32>
    %30 = arith.mulf %28, %29 : vector<40x512xf32>
    %cst_9 = arith.constant dense<0.000000e+00> : vector<512xf32>
    %31 = vector.multi_reduction <add>, %30, %cst_9 [0] : vector<40x512xf32> to vector<512xf32>
    %32 = vector.shape_cast %31 : vector<512xf32> to vector<1x512xf32>
    %33 = tpu.concatenate %23, %32 in 0 : vector<1x512xf32>, vector<1x512xf32> -> vector<2x512xf32>
    %c96 = arith.constant 96 : index
    %c0_10 = arith.constant 0 : index
    %34 = vector.load %arg1[%c96, %c0_10] : memref<104x640xf32, #tpu.memory_space<vmem>>, vector<1x1xf32>
    %35 = vector.broadcast %34 : vector<1x1xf32> to vector<2x512xf32>
    %36 = arith.addf %33, %35 : vector<2x512xf32>
    %c0_11 = arith.constant 0 : index
    %c0_12 = arith.constant 0 : index
    %37 = vector.load %arg2[%c0_11, %c0_12] : memref<2x640xf32, #tpu.memory_space<vmem>>, vector<2x512xf32>
    tpu.vector_store %arg2[%c0_11, %c0_12], %36 {strides = array<i32>} : memref<2x640xf32, #tpu.memory_space<vmem>>, vector<2x512xf32>,
    %c40 = arith.constant 40 : index
    %c0_13 = arith.constant 0 : index
    %38 = vector.load %arg1[%c40, %c0_13] : memref<104x640xf32, #tpu.memory_space<vmem>>, vector<32x64xf32>
    %39 = vector.extract_strided_slice %2 {offsets = [40, 0], sizes = [32, 1], strides = [1, 1]} : vector<96x1xf32> to vector<32x1xf32>
    %40 = vector.extract_strided_slice %7 {offsets = [40, 0], sizes = [32, 1], strides = [1, 1]} : vector<96x1xf32> to vector<32x1xf32>
    %41 = vector.broadcast %40 : vector<32x1xf32> to vector<32x64xf32>
    %42 = arith.addf %41, %38 : vector<32x64xf32>
    %cst_14 = arith.constant 0.000000e+00 : f32
    %43 = vector.broadcast %cst_14 : f32 to vector<32x64xf32>
    %44 = arith.maximumf %42, %43 : vector<32x64xf32>
    %45 = vector.broadcast %39 : vector<32x1xf32> to vector<32x64xf32>
    %46 = arith.mulf %44, %45 : vector<32x64xf32>
    %cst_15 = arith.constant dense<0.000000e+00> : vector<64xf32>
    %47 = vector.multi_reduction <add>, %46, %cst_15 [0] : vector<32x64xf32> to vector<64xf32>
    %48 = vector.shape_cast %47 : vector<64xf32> to vector<1x64xf32>
    %49 = vector.extract_strided_slice %12 {offsets = [40, 0], sizes = [32, 1], strides = [1, 1]} : vector<96x1xf32> to vector<32x1xf32>
    %50 = vector.broadcast %49 : vector<32x1xf32> to vector<32x64xf32>
    %51 = arith.addf %50, %38 : vector<32x64xf32>
    %cst_16 = arith.constant 0.000000e+00 : f32
    %52 = vector.broadcast %cst_16 : f32 to vector<32x64xf32>
    %53 = arith.maximumf %51, %52 : vector<32x64xf32>
    %54 = vector.broadcast %39 : vector<32x1xf32> to vector<32x64xf32>
    %55 = arith.mulf %53, %54 : vector<32x64xf32>
    %cst_17 = arith.constant dense<0.000000e+00> : vector<64xf32>
    %56 = vector.multi_reduction <add>, %55, %cst_17 [0] : vector<32x64xf32> to vector<64xf32>
    %57 = vector.shape_cast %56 : vector<64xf32> to vector<1x64xf32>
    %58 = tpu.concatenate %48, %57 in 0 : vector<1x64xf32>, vector<1x64xf32> -> vector<2x64xf32>
    %c96_18 = arith.constant 96 : index
    %c512_19 = arith.constant 512 : index
    %59 = vector.load %arg1[%c96_18, %c512_19] : memref<104x640xf32, #tpu.memory_space<vmem>>, vector<1x1xf32>
    %60 = vector.broadcast %59 : vector<1x1xf32> to vector<2x64xf32>
    %61 = arith.addf %58, %60 : vector<2x64xf32>
    %c0_20 = arith.constant 0 : index
    %c512_21 = arith.constant 512 : index
    %62 = vector.load %arg2[%c0_20, %c512_21] : memref<2x640xf32, #tpu.memory_space<vmem>>, vector<2x64xf32>
    tpu.vector_store %arg2[%c0_20, %c512_21], %61 {strides = array<i32>} : memref<2x640xf32, #tpu.memory_space<vmem>>, vector<2x64xf32>,
    %c72 = arith.constant 72 : index
    %c0_22 = arith.constant 0 : index
    %63 = vector.load %arg1[%c72, %c0_22] : memref<104x640xf32, #tpu.memory_space<vmem>>, vector<24x8xf32>
    %64 = vector.extract_strided_slice %2 {offsets = [72, 0], sizes = [24, 1], strides = [1, 1]} : vector<96x1xf32> to vector<24x1xf32>
    %65 = vector.extract_strided_slice %7 {offsets = [72, 0], sizes = [24, 1], strides = [1, 1]} : vector<96x1xf32> to vector<24x1xf32>
    %66 = vector.broadcast %65 : vector<24x1xf32> to vector<24x8xf32>
    %67 = arith.addf %66, %63 : vector<24x8xf32>
    %cst_23 = arith.constant 0.000000e+00 : f32
    %68 = vector.broadcast %cst_23 : f32 to vector<24x8xf32>
    %69 = arith.maximumf %67, %68 : vector<24x8xf32>
    %70 = vector.broadcast %64 : vector<24x1xf32> to vector<24x8xf32>
    %71 = arith.mulf %69, %70 : vector<24x8xf32>
    %cst_24 = arith.constant dense<0.000000e+00> : vector<8xf32>
    %72 = vector.multi_reduction <add>, %71, %cst_24 [0] : vector<24x8xf32> to vector<8xf32>
    %73 = vector.shape_cast %72 : vector<8xf32> to vector<1x8xf32>
    %74 = vector.extract_strided_slice %12 {offsets = [72, 0], sizes = [24, 1], strides = [1, 1]} : vector<96x1xf32> to vector<24x1xf32>
    %75 = vector.broadcast %74 : vector<24x1xf32> to vector<24x8xf32>
    %76 = arith.addf %75, %63 : vector<24x8xf32>
    %cst_25 = arith.constant 0.000000e+00 : f32
    %77 = vector.broadcast %cst_25 : f32 to vector<24x8xf32>
    %78 = arith.maximumf %76, %77 : vector<24x8xf32>
    %79 = vector.broadcast %64 : vector<24x1xf32> to vector<24x8xf32>
    %80 = arith.mulf %78, %79 : vector<24x8xf32>
    %cst_26 = arith.constant dense<0.000000e+00> : vector<8xf32>
    %81 = vector.multi_reduction <add>, %80, %cst_26 [0] : vector<24x8xf32> to vector<8xf32>
    %82 = vector.shape_cast %81 : vector<8xf32> to vector<1x8xf32>
    %83 = tpu.concatenate %73, %82 in 0 : vector<1x8xf32>, vector<1x8xf32> -> vector<2x8xf32>
    %c96_27 = arith.constant 96 : index
    %c576 = arith.constant 576 : index
    %84 = vector.load %arg1[%c96_27, %c576] : memref<104x640xf32, #tpu.memory_space<vmem>>, vector<1x1xf32>
    %85 = vector.broadcast %84 : vector<1x1xf32> to vector<2x8xf32>
    %86 = arith.addf %83, %85 : vector<2x8xf32>
    %c0_28 = arith.constant 0 : index
    %c576_29 = arith.constant 576 : index
    %87 = vector.load %arg2[%c0_28, %c576_29] : memref<2x640xf32, #tpu.memory_space<vmem>>, vector<2x8xf32>
    tpu.vector_store %arg2[%c0_28, %c576_29], %86 {strides = array<i32>} : memref<2x640xf32, #tpu.memory_space<vmem>>, vector<2x8xf32>,
    %cst_30 = arith.constant 0.000000e+00 : f32
    %88 = vector.broadcast %cst_30 : f32 to vector<2x56xf32>
    %c0_31 = arith.constant 0 : index
    %c584 = arith.constant 584 : index
    %89 = vector.load %arg2[%c0_31, %c584] : memref<2x640xf32, #tpu.memory_space<vmem>>, vector<2x56xf32>
    tpu.vector_store %arg2[%c0_31, %c584], %88 {strides = array<i32>} : memref<2x640xf32, #tpu.memory_space<vmem>>, vector<2x56xf32>,
    return
  }
}

</mosaic_0001>

<llo_original>
// kernel: forward.1
$region0: #{forward.1}
  #allocation0 [shape = 'u32[]', space=smem, size = 0x4, offset = 0x4, fixed_abs, tag = 'smem constant byte address 0x4 - core index']
  #allocation1 [shape = 'u32[144,128]{1,0:T(1,128)}', space=vmem, size = 0x12000, scoped, tag = 'internal scratch']
  %s0 = inlined_call_operand.hbm [shape: f32[2,32], index: 0, kind: input, shape index: {}]
  %s1 = inlined_call_operand.hbm [shape: f32[104,640], index: 1, kind: input, shape index: {}]
  %s2 = inlined_call_operand.vmem [shape: f32[2,640], index: 2, kind: output, shape index: {}]
  %s3 = sld [smem:[#allocation0]]
  $region26: #{forward.1} parent=0
    _
  %s5 = ssub.s32 1, %s3
  %s6 = scalar_select 0, %s5, %s3
  $region1: #{forward.1} parent=0
    #allocation2 [shape = 'u8[1024]{0}', space=vmem, size = 0x400, scoped, tag = 'input window, operand 0, single buffered']
    #allocation3 [shape = 's32[1]{0}', space=sflag, size = 0x4, scoped, tag = 'scoped memory for forward.1']
    #allocation4 [shape = 'u8[266240]{0}', space=vmem, size = 0x41000, scoped, tag = 'input window, operand 1, single buffered']
    #allocation5 [shape = 's32[1]{0}', space=sflag, size = 0x4, scoped, tag = 'scoped memory for forward.1']
    %7 = vsyncpa [#allocation3], 0
    %8 = vsyncpa [#allocation5], 0
    // Predicated region
    $region2: #{forward.1} parent=1 // pred_check
      _
    $region3: #{forward.1} parent=1 // pred_check_branch
      %10 = sbr.rel (0) target = $region5
    $region4: #{forward.1} parent=1 // pred_region
      %s12 = ssub.s32 32, 32
      %13 = vsyncadd [#allocation3], %s12
      %s15 = sshll.u32 [#allocation2], 4
      %s16 = int_to_ptr.vmem [resolvable:$true] %s15
      %18 = dma.hbm_to_vmem [thread:$0]  %s0, 32, %s16, [#allocation3]
    $region5: #{forward.1} parent=1 // pred_fallthru
      _
    // Predicated region
    $region6: #{forward.1} parent=1 // pred_check
      _
    $region7: #{forward.1} parent=1 // pred_check_branch
      %20 = sbr.rel (0) target = $region9
    $region8: #{forward.1} parent=1 // pred_region
      %s22 = ssub.s32 8320, 8320
      %23 = vsyncadd [#allocation5], %s22
      %s24 = sshll.u32 [#allocation4], 4
      %s25 = int_to_ptr.vmem [resolvable:$true] %s24
      %30 = dma.hbm_to_vmem [thread:$0]  %s1, 8320, %s25, [#allocation5], 640, 640, 40
    $region9: #{forward.1} parent=1 // pred_fallthru
      _
    // Predicated region
    $region10: #{forward.1} parent=1 // pred_check
      _
    $region11: #{forward.1} parent=1 // pred_check_branch
      %32 = sbr.rel (0) target = $region13
    $region12: #{forward.1} parent=1 // pred_region
      %33 = dma.done [#allocation3], 32
    $region13: #{forward.1} parent=1 // pred_fallthru
      _
    // Predicated region
    $region14: #{forward.1} parent=1 // pred_check
      _
    $region15: #{forward.1} parent=1 // pred_check_branch
      %35 = sbr.rel (0) target = $region17
    $region16: #{forward.1} parent=1 // pred_region
      %36 = dma.done [#allocation5], 8320
    $region17: #{forward.1} parent=1 // pred_fallthru
      _
    %v37 = vld [vmem:[#allocation2] sm:$0x3]
    %v38 = vld [vmem:[#allocation4 + $0x20] sm:$0xff]
    %v39 = vld [vmem:[#allocation4 + $0x48] sm:$0xff]
    %v40 = vld [vmem:[#allocation4 + $0x70] sm:$0xff]
    %v41 = vld [vmem:[#allocation4 + $0x98] sm:$0xff]
    %v42 = vld [vmem:[#allocation4 + $0xc0] sm:$0xff]
    %v43 = vld [vmem:[#allocation4 + $0xe8] sm:$0xff]
    %v44 = vld [vmem:[#allocation4 + $0x110] sm:$0xff]
    %v45 = vld [vmem:[#allocation4 + $0x138] sm:$0xff]
    %v46 = vld [vmem:[#allocation4 + $0x160] sm:$0xff]
    %v47 = vld [vmem:[#allocation4 + $0x188] sm:$0xff]
    %v48 = vld [vmem:[#allocation4 + $0x1b0] sm:$0xff]
    %v49 = vld [vmem:[#allocation4 + $0x1d8] sm:$0xff]
    %v50 = vlaneseq
    %v51 = vshrl.u32 %v50, 7
    %v52 = vsub.s32 0, %v51
    %v53 = vrot.slane %v37, %v52
    %v54 = vmul.f32 %v38, %v53
    %v55 = vmul.f32 %v39, %v53
    %v56 = vmul.f32 %v40, %v53
    %v57 = vmul.f32 %v41, %v53
    %v58 = vmul.f32 %v42, %v53
    %v59 = vmul.f32 %v43, %v53
    %v60 = vmul.f32 %v44, %v53
    %v61 = vmul.f32 %v45, %v53
    %v62 = vmul.f32 %v46, %v53
    %v63 = vmul.f32 %v47, %v53
    %v64 = vmul.f32 %v48, %v53
    %v65 = vmul.f32 %v49, %v53
    %vm66 = vcmask 261120
    %v67 = vsel %vm66, %v54, 0.0
    %68 = vadd.xlane.f32.xlu0 %v67
    %v69 = vpop.xlane.xlu0 %68
    %v70 = vsel %vm66, %v55, 0.0
    %71 = vadd.xlane.f32.xlu0 %v70
    %v72 = vpop.xlane.xlu0 %71
    %v73 = vsel %vm66, %v56, 0.0
    %74 = vadd.xlane.f32.xlu0 %v73
    %v75 = vpop.xlane.xlu0 %74
    %v76 = vsel %vm66, %v57, 0.0
    %77 = vadd.xlane.f32.xlu0 %v76
    %v78 = vpop.xlane.xlu0 %77
    %v79 = vsel %vm66, %v58, 0.0
    %80 = vadd.xlane.f32.xlu0 %v79
    %v81 = vpop.xlane.xlu0 %80
    %v82 = vsel %vm66, %v59, 0.0
    %83 = vadd.xlane.f32.xlu0 %v82
    %v84 = vpop.xlane.xlu0 %83
    %v85 = vsel %vm66, %v60, 0.0
    %86 = vadd.xlane.f32.xlu0 %v85
    %v87 = vpop.xlane.xlu0 %86
    %v88 = vsel %vm66, %v61, 0.0
    %89 = vadd.xlane.f32.xlu0 %v88
    %v90 = vpop.xlane.xlu0 %89
    %v91 = vsel %vm66, %v62, 0.0
    %92 = vadd.xlane.f32.xlu0 %v91
    %v93 = vpop.xlane.xlu0 %92
    %v94 = vsel %vm66, %v63, 0.0
    %95 = vadd.xlane.f32.xlu0 %v94
    %v96 = vpop.xlane.xlu0 %95
    %v97 = vsel %vm66, %v64, 0.0
    %98 = vadd.xlane.f32.xlu0 %v97
    %v99 = vpop.xlane.xlu0 %98
    %v100 = vsel %vm66, %v65, 0.0
    %101 = vadd.xlane.f32.xlu0 %v100
    %v102 = vpop.xlane.xlu0 %101
    %v103 = vlaneseq
    %v104 = vshrl.u32 %v103, 7
    %v105 = vsub.s32 1, %v104
    %v106 = vrot.slane %v37, %v105
    %v107 = vmul.f32 %v38, %v106
    %v108 = vmul.f32 %v39, %v106
    %v109 = vmul.f32 %v40, %v106
    %v110 = vmul.f32 %v41, %v106
    %v111 = vmul.f32 %v42, %v106
    %v112 = vmul.f32 %v43, %v106
    %v113 = vmul.f32 %v44, %v106
    %v114 = vmul.f32 %v45, %v106
    %v115 = vmul.f32 %v46, %v106
    %v116 = vmul.f32 %v47, %v106
    %v117 = vmul.f32 %v48, %v106
    %v118 = vmul.f32 %v49, %v106
    %v119 = vsel %vm66, %v107, 0.0
    %120 = vadd.xlane.f32.xlu0 %v119
    %v121 = vpop.xlane.xlu0 %120
    %v122 = vsel %vm66, %v108, 0.0
    %123 = vadd.xlane.f32.xlu0 %v122
    %v124 = vpop.xlane.xlu0 %123
    %v125 = vsel %vm66, %v109, 0.0
    %126 = vadd.xlane.f32.xlu0 %v125
    %v127 = vpop.xlane.xlu0 %126
    %v128 = vsel %vm66, %v110, 0.0
    %129 = vadd.xlane.f32.xlu0 %v128
    %v130 = vpop.xlane.xlu0 %129
    %v131 = vsel %vm66, %v111, 0.0
    %132 = vadd.xlane.f32.xlu0 %v131
    %v133 = vpop.xlane.xlu0 %132
    %v134 = vsel %vm66, %v112, 0.0
    %135 = vadd.xlane.f32.xlu0 %v134
    %v136 = vpop.xlane.xlu0 %135
    %v137 = vsel %vm66, %v113, 0.0
    %138 = vadd.xlane.f32.xlu0 %v137
    %v139 = vpop.xlane.xlu0 %138
    %v140 = vsel %vm66, %v114, 0.0
    %141 = vadd.xlane.f32.xlu0 %v140
    %v142 = vpop.xlane.xlu0 %141
    %v143 = vsel %vm66, %v115, 0.0
    %144 = vadd.xlane.f32.xlu0 %v143
    %v145 = vpop.xlane.xlu0 %144
    %v146 = vsel %vm66, %v116, 0.0
    %147 = vadd.xlane.f32.xlu0 %v146
    %v148 = vpop.xlane.xlu0 %147
    %v149 = vsel %vm66, %v117, 0.0
    %150 = vadd.xlane.f32.xlu0 %v149
    %v151 = vpop.xlane.xlu0 %150
    %v152 = vsel %vm66, %v118, 0.0
    %153 = vadd.xlane.f32.xlu0 %v152
    %v154 = vpop.xlane.xlu0 %153
    %v155 = vld [vmem:[#allocation4] sm:$0xff]
    %v156 = vld [vmem:[#allocation4 + $0x8] sm:$0xff]
    %v157 = vld [vmem:[#allocation4 + $0x10] sm:$0xff]
    %v158 = vld [vmem:[#allocation4 + $0x18] sm:$0xff]
    %v159 = vld [vmem:[#allocation4 + $0x28] sm:$0xff]
    %v160 = vld [vmem:[#allocation4 + $0x30] sm:$0xff]
    %v161 = vld [vmem:[#allocation4 + $0x38] sm:$0xff]
    %v162 = vld [vmem:[#allocation4 + $0x40] sm:$0xff]
    %v163 = vld [vmem:[#allocation4 + $0x50] sm:$0xff]
    %v164 = vld [vmem:[#allocation4 + $0x58] sm:$0xff]
    %v165 = vld [vmem:[#allocation4 + $0x60] sm:$0xff]
    %v166 = vld [vmem:[#allocation4 + $0x68] sm:$0xff]
    %v167 = vld [vmem:[#allocation4 + $0x78] sm:$0xff]
    %v168 = vld [vmem:[#allocation4 + $0x80] sm:$0xff]
    %v169 = vld [vmem:[#allocation4 + $0x88] sm:$0xff]
    %v170 = vld [vmem:[#allocation4 + $0x90] sm:$0xff]
    %v171 = vld [vmem:[#allocation4 + $0xa0] sm:$0xff]
    %v172 = vld [vmem:[#allocation4 + $0xa8] sm:$0xff]
    %v173 = vld [vmem:[#allocation4 + $0xb0] sm:$0xff]
    %v174 = vld [vmem:[#allocation4 + $0xb8] sm:$0xff]
    %v175 = vadd.f32 %v69, %v155
    %v176 = vadd.f32 %v69, %v156
    %v177 = vadd.f32 %v69, %v157
    %v178 = vadd.f32 %v69, %v158
    %v179 = vadd.f32 %v72, %v159
    %v180 = vadd.f32 %v72, %v160
    %v181 = vadd.f32 %v72, %v161
    %v182 = vadd.f32 %v72, %v162
    %v183 = vadd.f32 %v75, %v163
    %v184 = vadd.f32 %v75, %v164
    %v185 = vadd.f32 %v75, %v165
    %v186 = vadd.f32 %v75, %v166
    %v187 = vadd.f32 %v78, %v167
    %v188 = vadd.f32 %v78, %v168
    %v189 = vadd.f32 %v78, %v169
    %v190 = vadd.f32 %v78, %v170
    %v191 = vadd.f32 %v81, %v171
    %v192 = vadd.f32 %v81, %v172
    %v193 = vadd.f32 %v81, %v173
    %v194 = vadd.f32 %v81, %v174
    %v195 = vmax.f32 %v175, 0.0
    %v196 = vmax.f32 %v176, 0.0
    %v197 = vmax.f32 %v177, 0.0
    %v198 = vmax.f32 %v178, 0.0
    %v199 = vmax.f32 %v179, 0.0
    %v200 = vmax.f32 %v180, 0.0
    %v201 = vmax.f32 %v181, 0.0
    %v202 = vmax.f32 %v182, 0.0
    %v203 = vmax.f32 %v183, 0.0
    %v204 = vmax.f32 %v184, 0.0
    %v205 = vmax.f32 %v185, 0.0
    %v206 = vmax.f32 %v186, 0.0
    %v207 = vmax.f32 %v187, 0.0
    %v208 = vmax.f32 %v188, 0.0
    %v209 = vmax.f32 %v189, 0.0
    %v210 = vmax.f32 %v190, 0.0
    %v211 = vmax.f32 %v191, 0.0
    %v212 = vmax.f32 %v192, 0.0
    %v213 = vmax.f32 %v193, 0.0
    %v214 = vmax.f32 %v194, 0.0
    %216 = vset.pattern.permute.xlu0 32
    %217 = vperm.xlu0 %216, %v38
    %v218 = vpop.permute.xlu0 %217
    %221 = vset.pattern.permute.xlu0 32
    %222 = vperm.xlu0 %221, %v39
    %v223 = vpop.permute.xlu0 %222
    %226 = vset.pattern.permute.xlu0 32
    %227 = vperm.xlu0 %226, %v40
    %v228 = vpop.permute.xlu0 %227
    %231 = vset.pattern.permute.xlu0 32
    %232 = vperm.xlu0 %231, %v41
    %v233 = vpop.permute.xlu0 %232
    %236 = vset.pattern.permute.xlu0 32
    %237 = vperm.xlu0 %236, %v42
    %v238 = vpop.permute.xlu0 %237
    %v240 = vmul.f32 %v195, %v218
    %v241 = vmul.f32 %v196, %v218
    %v242 = vmul.f32 %v197, %v218
    %v243 = vmul.f32 %v198, %v218
    %v244 = vmul.f32 %v199, %v223
    %v245 = vmul.f32 %v200, %v223
    %v246 = vmul.f32 %v201, %v223
    %v247 = vmul.f32 %v202, %v223
    %v248 = vmul.f32 %v203, %v228
    %v249 = vmul.f32 %v204, %v228
    %v250 = vmul.f32 %v205, %v228
    %v251 = vmul.f32 %v206, %v228
    %v252 = vmul.f32 %v207, %v233
    %v253 = vmul.f32 %v208, %v233
    %v254 = vmul.f32 %v209, %v233
    %v255 = vmul.f32 %v210, %v233
    %v256 = vmul.f32 %v211, %v238
    %v257 = vmul.f32 %v212, %v238
    %v258 = vmul.f32 %v213, %v238
    %v259 = vmul.f32 %v214, %v238
    %v260 = vadd.f32 %v240, %v244
    %v261 = vadd.f32 %v260, %v248
    %v262 = vadd.f32 %v261, %v252
    %v263 = vadd.f32 %v262, %v256
    %v264 = vrot.slane %v263, 4
    %v265 = vadd.f32 %v263, %v264
    %v266 = vrot.slane %v265, 2
    %v267 = vadd.f32 %v265, %v266
    %v268 = vrot.slane %v267, 1
    %v269 = vadd.f32 %v267, %v268
    %v270 = vadd.f32 %v241, %v245
    %v271 = vadd.f32 %v270, %v249
    %v272 = vadd.f32 %v271, %v253
    %v273 = vadd.f32 %v272, %v257
    %v274 = vrot.slane %v273, 4
    %v275 = vadd.f32 %v273, %v274
    %v276 = vrot.slane %v275, 2
    %v277 = vadd.f32 %v275, %v276
    %v278 = vrot.slane %v277, 1
    %v279 = vadd.f32 %v277, %v278
    %v280 = vadd.f32 %v242, %v246
    %v281 = vadd.f32 %v280, %v250
    %v282 = vadd.f32 %v281, %v254
    %v283 = vadd.f32 %v282, %v258
    %v284 = vrot.slane %v283, 4
    %v285 = vadd.f32 %v283, %v284
    %v286 = vrot.slane %v285, 2
    %v287 = vadd.f32 %v285, %v286
    %v288 = vrot.slane %v287, 1
    %v289 = vadd.f32 %v287, %v288
    %v290 = vadd.f32 %v243, %v247
    %v291 = vadd.f32 %v290, %v251
    %v292 = vadd.f32 %v291, %v255
    %v293 = vadd.f32 %v292, %v259
    %v294 = vrot.slane %v293, 4
    %v295 = vadd.f32 %v293, %v294
    %v296 = vrot.slane %v295, 2
    %v297 = vadd.f32 %v295, %v296
    %v298 = vrot.slane %v297, 1
    %v299 = vadd.f32 %v297, %v298
    %v300 = vadd.f32 %v121, %v155
    %v301 = vadd.f32 %v121, %v156
    %v302 = vadd.f32 %v121, %v157
    %v303 = vadd.f32 %v121, %v158
    %v304 = vadd.f32 %v124, %v159
    %v305 = vadd.f32 %v124, %v160
    %v306 = vadd.f32 %v124, %v161
    %v307 = vadd.f32 %v124, %v162
    %v308 = vadd.f32 %v127, %v163
    %v309 = vadd.f32 %v127, %v164
    %v310 = vadd.f32 %v127, %v165
    %v311 = vadd.f32 %v127, %v166
    %v312 = vadd.f32 %v130, %v167
    %v313 = vadd.f32 %v130, %v168
    %v314 = vadd.f32 %v130, %v169
    %v315 = vadd.f32 %v130, %v170
    %v316 = vadd.f32 %v133, %v171
    %v317 = vadd.f32 %v133, %v172
    %v318 = vadd.f32 %v133, %v173
    %v319 = vadd.f32 %v133, %v174
    %v320 = vmax.f32 %v300, 0.0
    %v321 = vmax.f32 %v301, 0.0
    %v322 = vmax.f32 %v302, 0.0
    %v323 = vmax.f32 %v303, 0.0
    %v324 = vmax.f32 %v304, 0.0
    %v325 = vmax.f32 %v305, 0.0
    %v326 = vmax.f32 %v306, 0.0
    %v327 = vmax.f32 %v307, 0.0
    %v328 = vmax.f32 %v308, 0.0
    %v329 = vmax.f32 %v309, 0.0
    %v330 = vmax.f32 %v310, 0.0
    %v331 = vmax.f32 %v311, 0.0
    %v332 = vmax.f32 %v312, 0.0
    %v333 = vmax.f32 %v313, 0.0
    %v334 = vmax.f32 %v314, 0.0
    %v335 = vmax.f32 %v315, 0.0
    %v336 = vmax.f32 %v316, 0.0
    %v337 = vmax.f32 %v317, 0.0
    %v338 = vmax.f32 %v318, 0.0
    %v339 = vmax.f32 %v319, 0.0
    %v340 = vmul.f32 %v320, %v218
    %v341 = vmul.f32 %v321, %v218
    %v342 = vmul.f32 %v322, %v218
    %v343 = vmul.f32 %v323, %v218
    %v344 = vmul.f32 %v324, %v223
    %v345 = vmul.f32 %v325, %v223
    %v346 = vmul.f32 %v326, %v223
    %v347 = vmul.f32 %v327, %v223
    %v348 = vmul.f32 %v328, %v228
    %v349 = vmul.f32 %v329, %v228
    %v350 = vmul.f32 %v330, %v228
    %v351 = vmul.f32 %v331, %v228
    %v352 = vmul.f32 %v332, %v233
    %v353 = vmul.f32 %v333, %v233
    %v354 = vmul.f32 %v334, %v233
    %v355 = vmul.f32 %v335, %v233
    %v356 = vmul.f32 %v336, %v238
    %v357 = vmul.f32 %v337, %v238
    %v358 = vmul.f32 %v338, %v238
    %v359 = vmul.f32 %v339, %v238
    %v360 = vadd.f32 %v340, %v344
    %v361 = vadd.f32 %v360, %v348
    %v362 = vadd.f32 %v361, %v352
    %v363 = vadd.f32 %v362, %v356
    %v364 = vrot.slane %v363, 4
    %v365 = vadd.f32 %v363, %v364
    %v366 = vrot.slane %v365, 2
    %v367 = vadd.f32 %v365, %v366
    %v368 = vrot.slane %v367, 1
    %v369 = vadd.f32 %v367, %v368
    %v370 = vadd.f32 %v341, %v345
    %v371 = vadd.f32 %v370, %v349
    %v372 = vadd.f32 %v371, %v353
    %v373 = vadd.f32 %v372, %v357
    %v374 = vrot.slane %v373, 4
    %v375 = vadd.f32 %v373, %v374
    %v376 = vrot.slane %v375, 2
    %v377 = vadd.f32 %v375, %v376
    %v378 = vrot.slane %v377, 1
    %v379 = vadd.f32 %v377, %v378
    %v380 = vadd.f32 %v342, %v346
    %v381 = vadd.f32 %v380, %v350
    %v382 = vadd.f32 %v381, %v354
    %v383 = vadd.f32 %v382, %v358
    %v384 = vrot.slane %v383, 4
    %v385 = vadd.f32 %v383, %v384
    %v386 = vrot.slane %v385, 2
    %v387 = vadd.f32 %v385, %v386
    %v388 = vrot.slane %v387, 1
    %v389 = vadd.f32 %v387, %v388
    %v390 = vadd.f32 %v343, %v347
    %v391 = vadd.f32 %v390, %v351
    %v392 = vadd.f32 %v391, %v355
    %v393 = vadd.f32 %v392, %v359
    %v394 = vrot.slane %v393, 4
    %v395 = vadd.f32 %v393, %v394
    %v396 = vrot.slane %v395, 2
    %v397 = vadd.f32 %v395, %v396
    %v398 = vrot.slane %v397, 1
    %v399 = vadd.f32 %v397, %v398
    %vm400 = vcmask 1040384
    %v401 = vsel %vm400, %v269, %v369
    %v402 = vsel %vm400, %v279, %v379
    %v403 = vsel %vm400, %v289, %v389
    %v404 = vsel %vm400, %v299, %v399
    %v405 = vld [vmem:[#allocation4 + $0x1e0] ss:$0 sm:$0xff]
    %407 = vset.pattern.permute.xlu0 0
    %408 = vperm.xlu0 %407, %v405
    %v409 = vpop.permute.xlu0 %408
    %v411 = vadd.f32 %v401, %v409
    %v412 = vadd.f32 %v402, %v409
    %v413 = vadd.f32 %v403, %v409
    %v414 = vadd.f32 %v404, %v409
    %v419 = vcombine.low %v411, %v412
    %v420 = vcombine.low %v413, %v414
    %v422 = vunpack.c.l.s4 1983009808
    %v423 = vunpack.c.0.s8 %v422
    %v424 = vlaneseq
    %v425 = vshrl.u32 %v424, 7
    %v426 = vsub.s32 %v423, %v425
    %v427 = vrot.slane %v419, %v426
    %v429 = vunpack.c.l.s4 1983009808
    %v430 = vunpack.c.0.s8 %v429
    %v431 = vlaneseq
    %v432 = vshrl.u32 %v431, 7
    %v433 = vsub.s32 %v430, %v432
    %v434 = vrot.slane %v420, %v433
    %v435 = vcombine.low %v427, %v434
    %437 = vst [vmem:[%s2] sm:$0xff] %v435
    %v438 = vld [vmem:[#allocation4 + $0xc8] sm:$0xff]
    %v439 = vld [vmem:[#allocation4 + $0xf0] sm:$0xff]
    %v440 = vld [vmem:[#allocation4 + $0x118] sm:$0xff]
    %v441 = vld [vmem:[#allocation4 + $0x140] sm:$0xff]
    %v442 = vadd.f32 %v84, %v438
    %v443 = vadd.f32 %v87, %v439
    %v444 = vadd.f32 %v90, %v440
    %v445 = vadd.f32 %v93, %v441
    %v446 = vmax.f32 %v442, 0.0
    %v447 = vmax.f32 %v443, 0.0
    %v448 = vmax.f32 %v444, 0.0
    %v449 = vmax.f32 %v445, 0.0
    %451 = vset.pattern.permute.xlu0 32
    %452 = vperm.xlu0 %451, %v43
    %v453 = vpop.permute.xlu0 %452
    %456 = vset.pattern.permute.xlu0 32
    %457 = vperm.xlu0 %456, %v44
    %v458 = vpop.permute.xlu0 %457
    %461 = vset.pattern.permute.xlu0 32
    %462 = vperm.xlu0 %461, %v45
    %v463 = vpop.permute.xlu0 %462
    %466 = vset.pattern.permute.xlu0 32
    %467 = vperm.xlu0 %466, %v46
    %v468 = vpop.permute.xlu0 %467
    %v470 = vmul.f32 %v446, %v453
    %v471 = vmul.f32 %v447, %v458
    %v472 = vmul.f32 %v448, %v463
    %v473 = vmul.f32 %v449, %v468
    %vm474 = vcmask 523264
    %v475 = vsel %vm474, %v470, 0.0
    %v476 = vsel %vm474, %v471, 0.0
    %v477 = vadd.f32 %v475, %v476
    %v478 = vsel %vm474, %v472, 0.0
    %v479 = vadd.f32 %v477, %v478
    %v480 = vsel %vm474, %v473, 0.0
    %v481 = vadd.f32 %v479, %v480
    %v482 = vrot.slane %v481, 4
    %v483 = vadd.f32 %v481, %v482
    %v484 = vrot.slane %v483, 2
    %v485 = vadd.f32 %v483, %v484
    %v486 = vrot.slane %v485, 1
    %v487 = vadd.f32 %v485, %v486
    %v488 = vadd.f32 %v136, %v438
    %v489 = vadd.f32 %v139, %v439
    %v490 = vadd.f32 %v142, %v440
    %v491 = vadd.f32 %v145, %v441
    %v492 = vmax.f32 %v488, 0.0
    %v493 = vmax.f32 %v489, 0.0
    %v494 = vmax.f32 %v490, 0.0
    %v495 = vmax.f32 %v491, 0.0
    %v496 = vmul.f32 %v492, %v453
    %v497 = vmul.f32 %v493, %v458
    %v498 = vmul.f32 %v494, %v463
    %v499 = vmul.f32 %v495, %v468
    %v500 = vsel %vm474, %v496, 0.0
    %v501 = vsel %vm474, %v497, 0.0
    %v502 = vadd.f32 %v500, %v501
    %v503 = vsel %vm474, %v498, 0.0
    %v504 = vadd.f32 %v502, %v503
    %v505 = vsel %vm474, %v499, 0.0
    %v506 = vadd.f32 %v504, %v505
    %v507 = vrot.slane %v506, 4
    %v508 = vadd.f32 %v506, %v507
    %v509 = vrot.slane %v508, 2
    %v510 = vadd.f32 %v508, %v509
    %v511 = vrot.slane %v510, 1
    %v512 = vadd.f32 %v510, %v511
    %v513 = vsel %vm400, %v487, %v512
    %v514 = vld [vmem:[#allocation4 + $0x200] ss:$0 sm:$0xff]
    %516 = vset.pattern.permute.xlu0 0
    %517 = vperm.xlu0 %516, %v514
    %v518 = vpop.permute.xlu0 %517
    %v520 = vadd.f32 %v513, %v518
    %vm521 = vcmask 517120
    %522 = vst.msk [vmem:[%s2 + $0x8] sm:$0x3] %vm521, %v520
    %v523 = vld [vmem:[#allocation4 + $0x168] sm:$0xff]
    %v524 = vld [vmem:[#allocation4 + $0x190] sm:$0xff]
    %v525 = vld [vmem:[#allocation4 + $0x1b8] sm:$0xff]
    %v526 = vadd.f32 %v96, %v523
    %v527 = vadd.f32 %v99, %v524
    %v528 = vadd.f32 %v102, %v525
    %v529 = vmax.f32 %v526, 0.0
    %v530 = vmax.f32 %v527, 0.0
    %v531 = vmax.f32 %v528, 0.0
    %533 = vset.pattern.permute.xlu0 32
    %534 = vperm.xlu0 %533, %v47
    %v535 = vpop.permute.xlu0 %534
    %538 = vset.pattern.permute.xlu0 32
    %539 = vperm.xlu0 %538, %v48
    %v540 = vpop.permute.xlu0 %539
    %543 = vset.pattern.permute.xlu0 32
    %544 = vperm.xlu0 %543, %v49
    %v545 = vpop.permute.xlu0 %544
    %v547 = vmul.f32 %v529, %v535
    %v548 = vmul.f32 %v530, %v540
    %v549 = vmul.f32 %v531, %v545
    %vm550 = vcmask 64512
    %v551 = vsel %vm550, %v547, 0.0
    %v552 = vsel %vm550, %v548, 0.0
    %v553 = vadd.f32 %v551, %v552
    %v554 = vsel %vm550, %v549, 0.0
    %v555 = vadd.f32 %v553, %v554
    %v556 = vrot.slane %v555, 4
    %v557 = vadd.f32 %v555, %v556
    %v558 = vrot.slane %v557, 2
    %v559 = vadd.f32 %v557, %v558
    %v560 = vrot.slane %v559, 1
    %v561 = vadd.f32 %v559, %v560
    %v562 = vadd.f32 %v148, %v523
    %v563 = vadd.f32 %v151, %v524
    %v564 = vadd.f32 %v154, %v525
    %v565 = vmax.f32 %v562, 0.0
    %v566 = vmax.f32 %v563, 0.0
    %v567 = vmax.f32 %v564, 0.0
    %v568 = vmul.f32 %v565, %v535
    %v569 = vmul.f32 %v566, %v540
    %v570 = vmul.f32 %v567, %v545
    %v571 = vsel %vm550, %v568, 0.0
    %v572 = vsel %vm550, %v569, 0.0
    %v573 = vadd.f32 %v571, %v572
    %v574 = vsel %vm550, %v570, 0.0
    %v575 = vadd.f32 %v573, %v574
    %v576 = vrot.slane %v575, 4
    %v577 = vadd.f32 %v575, %v576
    %v578 = vrot.slane %v577, 2
    %v579 = vadd.f32 %v577, %v578
    %v580 = vrot.slane %v579, 1
    %v581 = vadd.f32 %v579, %v580
    %v582 = vsel %vm400, %v561, %v581
    %v583 = vld [vmem:[#allocation4 + $0x200] ss:$0 sm:$0xff]
    %585 = vset.pattern.permute.xlu0 64
    %586 = vperm.xlu0 %585, %v583
    %v587 = vpop.permute.xlu0 %586
    %v589 = vadd.f32 %v582, %v587
    %v592 = vunpack.c.l.s4 1983009808
    %v593 = vunpack.c.0.s8 %v592
    %v594 = vlaneseq
    %v595 = vshrl.u32 %v594, 7
    %v596 = vsub.s32 %v593, %v595
    %v597 = vrot.slane %v589, %v596
    %598 = vrot.lane.b32.xlu0 %v597, 64
    %v599 = vpop.permute.xlu0 %598
    %vm601 = vcmask 583168
    %602 = vst.msk [vmem:[%s2 + $0x8] sm:$0x3] %vm601, %v599
    %vm603 = vcmask 1041984
    %604 = vst.msk [vmem:[%s2 + $0x8] sm:$0x3] %vm603, 0.0
    // Predicated region
    $region18: #{forward.1} parent=1 // pred_check
      _
    $region19: #{forward.1} parent=1 // pred_check_branch
      %606 = sbr.rel (0) target = $region21
    $region20: #{forward.1} parent=1 // pred_region
      _
    $region21: #{forward.1} parent=1 // pred_fallthru
      _
    // Predicated region
    $region22: #{forward.1} parent=1 // pred_check
      _
    $region23: #{forward.1} parent=1 // pred_check_branch
      %608 = sbr.rel (0) target = $region25
    $region24: #{forward.1} parent=1 // pred_region
      _
    $region25: #{forward.1} parent=1 // pred_fallthru
      _
    %609 = vsyncpa [#allocation3], 1
    %610 = vsyncpa [#allocation5], 1

</llo_original>
